<compile_context>
chip_gen: v5e
topology: v5e:2x2
jax: 0.10.0
libtpu: 0.0.40
codegen_flags: <defaults>
</compile_context>

<pallas_src>
import functools
import math

import numpy as np

import jax
import jax.numpy as jnp
from jax import lax
from jax.experimental import pallas as pl
from jax.experimental.pallas import tpu as pltpu


def _round_up(x, m):
    return ((x + m - 1) // m) * m


def _tpu_budgets():
    """Generation-gated budgets: (vmem_limit, batch-tile budget, channel-tile
    budget).  v5e/v6e have 128 MiB VMEM per TensorCore; v7x only 64 MiB."""
    phys = 64 << 20
    try:
        info = pltpu.get_tpu_info()
        for name in ("vmem_capacity_bytes", "vmem_size_bytes", "vmem_bytes"):
            v = getattr(info, name, None)
            if v:
                phys = int(v)
                break
    except Exception:
        pass
    if phys >= (100 << 20):                       # v5e / v6e
        return 64 << 20, 12 << 20, 24 << 20
    return 40 << 20, 4 << 20, 10 << 20            # v7x-safe


_VMEM_LIMIT, _TB_BUDGET, _TC_BUDGET = _tpu_budgets()


def _pick_tb(bh, per_row_bytes, budget_bytes):
    """Batch-tile for the (TB, w, w) kernels.  Prefers an exact divisor of bh
    (no batch-pad copy); pads only as a last resort."""
    max_tb = max(1, budget_bytes // max(per_row_bytes, 1))
    if bh <= max_tb:
        if bh >= 16 and bh % 2 == 0:
            return bh // 2, bh        # >=2 grid steps keeps both v7x cores busy
        return bh, bh
    best = None
    for d in range(max_tb, 0, -1):
        if bh % d == 0:
            best = d
            break
    if best is not None and best * 8 >= max_tb:
        return best, bh               # exact divisor: no padding copy
    tb = max(8, (max_tb // 8) * 8)
    return tb, _round_up(bh, tb)


# ----------------------------------------------------------------------------
# Kernel 1: banded (tril/triu) masked softmax over the last dim, batched TB.
# ----------------------------------------------------------------------------
def _masked_softmax_kernel(cost_ref, att_ref, *, max_disp, lower):
    c = cost_ref[...]                                   # (TB, w, w)
    w = c.shape[-1]
    row = lax.broadcasted_iota(jnp.int32, (w, w), 0)
    col = lax.broadcasted_iota(jnp.int32, (w, w), 1)
    if lower:
        keep = col <= row
        if max_disp > 0:
            keep = jnp.logical_and(keep, col > row - max_disp)
    else:
        keep = col >= row
        if max_disp > 0:
            keep = jnp.logical_and(keep, col < row + max_disp)
    c1 = jnp.where(keep, c, 0.0)                        # tril/triu (+band), torch-match
    cmax = jnp.max(c1, axis=-1, keepdims=True)          # max includes the zeros (torch)
    e = jnp.where(keep, jnp.exp(c1 - cmax), 0.0)        # re-mask after exp
    att_ref[...] = e / (jnp.sum(e, axis=-1, keepdims=True) + 1e-8)


def masked_band_softmax(cost, max_disp, lower):
    b, h, w, _ = cost.shape
    bh = b * h
    c2 = cost.reshape(bh, w, w).astype(jnp.float32)
    per_row = w * w * 4 * 4                              # in + out, double-buffered
    tb, bhp = _pick_tb(bh, per_row, _TB_BUDGET)
    if bhp != bh:
        c2 = jnp.pad(c2, ((0, bhp - bh), (0, 0), (0, 0)))
    att = pl.pallas_call(
        functools.partial(_masked_softmax_kernel,
                          max_disp=int(max_disp), lower=bool(lower)),
        grid=(bhp // tb,),
        in_specs=[pl.BlockSpec((tb, w, w), lambda i: (i, 0, 0))],
        out_specs=pl.BlockSpec((tb, w, w), lambda i: (i, 0, 0)),
        out_shape=jax.ShapeDtypeStruct((bhp, w, w), jnp.float32),
        compiler_params=pltpu.CompilerParams(
            dimension_semantics=("parallel",),
            vmem_limit_bytes=_VMEM_LIMIT),
    )(c2)
    if bhp != bh:
        att = att[:bh]
    return att.reshape(b, h, w, w)


# ----------------------------------------------------------------------------
# Kernel 2: bilateral filter (channel-tiled, in-kernel zero halo) with the
#           space*color weights hoisted across channel tiles, plus fused
#           disp_ini rows and column sums.
#   x    : (Bg, C, H, W)   unpadded input, block (1, TC, H, W)
#   mean : (Bg, H, W)      unpadded channel-mean plane, block (1, H, W)
#   space: (Bg, k*k) SMEM  normalized spatial gaussian (runtime values)
#   scal : (Bg,)     SMEM  1 / (2*sigma2^2)
# ----------------------------------------------------------------------------
def _bilateral_kernel(x_ref, mean_ref, space_ref, scal_ref,
                      filt_ref, disp_ref, colsum_ref,
                      xpad_ref, mpad_ref, w_ref, inv_ref, *, k, H, W):
    bi = pl.program_id(0)
    ci = pl.program_id(1)
    p = k // 2

    # --- once per batch index (per core): zero halos, build padded mean,
    #     compute the k*k space*color weight planes and 1/denominator.
    @pl.when(ci == 0)
    def _():
        xpad_ref[...] = jnp.zeros_like(xpad_ref)     # border stays zero across ci
        mpad_ref[...] = jnp.zeros_like(mpad_ref)
        mpad_ref[p:p + H, p:p + W] = mean_ref[0]
        center = mean_ref[0]                         # (H, W)
        inv2s2 = scal_ref[bi]
        csum = jnp.zeros((H, W), jnp.float32)
        s_acc = jnp.zeros((H, W), jnp.float32)
        for dj in range(k):                          # dj-outer: lane shift hoisted
            ms = mpad_ref[:, dj:dj + W]              # (Hp, W)
            for di in range(k):
                c = jnp.exp(-((ms[di:di + H, :] - center) ** 2) * inv2s2)
                sp = space_ref[bi, di * k + dj]
                wtap = sp * c
                w_ref[di * k + dj] = wtap
                csum = csum + c
                s_acc = s_acc + wtap
        # torch: weight = sp*(c/csum); weight /= weight.sum(0,1) + 1e-8
        #   =>   filtered = sum_d x_d*sp_d*c_d / (S + 1e-8*csum)
        inv_ref[...] = 1.0 / (s_acc + 1e-8 * csum)

    # --- per channel tile: copy interior into the halo scratch, then a pure
    #     multiply-accumulate stream over the precomputed weight planes.
    xpad_ref[:, p:p + H, p:p + W] = x_ref[0]
    tc = x_ref.shape[1]
    acc = jnp.zeros((tc, H, W), jnp.float32)
    for dj in range(k):                              # dj-outer: lane shift hoisted
        xs = xpad_ref[:, :, dj:dj + W]               # (tc, Hp, W)
        for di in range(k):
            acc = acc + xs[:, di:di + H, :] * w_ref[di * k + dj][None, :, :]
    filt = acc * inv_ref[...][None, :, :]
    filt_ref[0] = filt

    # fused reductions (saves HBM re-reads of the attention volume):
    #   disp_ini[x] = x - sum_j att[x, j]*j ;  colsum[j] = sum_x att[x, j]
    jw = lax.broadcasted_iota(jnp.int32, (1, W), 1).astype(jnp.float32)
    xi = lax.broadcasted_iota(jnp.int32, (tc, H), 1).astype(jnp.float32)
    disp_ref[0] = xi - jnp.sum(filt * jw[None, :, :], axis=-1)     # (TC, H)
    colsum_ref[0] = jnp.sum(filt, axis=1)                          # (TC, W)


def _pick_channel_tile(C, H, W, k, budget_bytes):
    p = k // 2
    Hp, Wp = H + 2 * p, W + 2 * p
    fixed = (k * k + 1) * H * W * 4 + Hp * Wp * 4 + 2 * H * W * 4
    avail = max(budget_bytes - fixed, 1 << 20)

    def fits(tc):
        per = tc * (Hp * Wp * 4            # halo scratch
                    + 2 * 2 * H * W * 4    # x in + filt out, double-buffered
                    + H * W * 4)           # live accumulator
        return per <= avail

    valid = [d for d in range(C, 0, -1)
             if C % d == 0 and (d == C or d % 8 == 0)]   # out-spec needs d%8==0 or d==C
    for d in valid:
        if fits(d):
            return d
    # TODO(synk): very large H*W would additionally need spatial halo tiling.
    return valid[-1]


_BILATERAL_CACHE = {}


def _get_bilateral_fn(ks, bg, C, H, W):
    """Cached, jitted bilateral call specialized only on ks in {3,5} + shapes."""
    key = (ks, bg, C, H, W)
    fn = _BILATERAL_CACHE.get(key)
    if fn is not None:
        return fn

    p = ks // 2
    Hp, Wp = H + 2 * p, W + 2 * p
    tc = _pick_channel_tile(C, H, W, ks, _TC_BUDGET)
    n_c = C // tc
    # TODO(synk): on v7x with bg*n_c < 4 an extra H-row tile axis would keep
    # both TensorCores busy; omitted here (needs halo-aware row tiling).

    call = pl.pallas_call(
        functools.partial(_bilateral_kernel, k=ks, H=H, W=W),
        grid=(bg, n_c),
        in_specs=[
            pl.BlockSpec((1, tc, H, W), lambda bi, ci: (bi, ci, 0, 0)),
            pl.BlockSpec((1, H, W), lambda bi, ci: (bi, 0, 0)),
            pl.BlockSpec(memory_space=pltpu.MemorySpace.SMEM),
            pl.BlockSpec(memory_space=pltpu.MemorySpace.SMEM),
        ],
        out_specs=[
            pl.BlockSpec((1, tc, H, W), lambda bi, ci: (bi, ci, 0, 0)),
            pl.BlockSpec((1, tc, H), lambda bi, ci: (bi, ci, 0)),
            pl.BlockSpec((1, tc, W), lambda bi, ci: (bi, ci, 0)),
        ],
        out_shape=(
            jax.ShapeDtypeStruct((bg, C, H, W), jnp.float32),
            jax.ShapeDtypeStruct((bg, C, H), jnp.float32),
            jax.ShapeDtypeStruct((bg, C, W), jnp.float32),
        ),
        scratch_shapes=[
            pltpu.VMEM((tc, Hp, Wp), jnp.float32),      # zero-halo channel block
            pltpu.VMEM((Hp, Wp), jnp.float32),          # zero-halo mean plane
            pltpu.VMEM((ks * ks, H, W), jnp.float32),   # hoisted space*color weights
            pltpu.VMEM((H, W), jnp.float32),            # hoisted 1/denominator
        ],
        compiler_params=pltpu.CompilerParams(
            dimension_semantics=("parallel", "arbitrary"),
            vmem_limit_bytes=_VMEM_LIMIT),
    )

    def fn(xg, space, scal):
        meanp = jnp.mean(xg, axis=1)                    # (bg, H, W), unpadded
        return call(xg, meanp, space, scal)

    fn = jax.jit(fn)
    _BILATERAL_CACHE[key] = fn
    return fn


def bilateral_filter_fused(x, params):
    """x: (B, C, H, W) f32, params: (B, 3) -> (filtered, disp_rows, colsum)."""
    B, C, H, W = x.shape
    x = x.astype(jnp.float32)

    # TODO(synk): the reference picks the (data-dependent) kernel size with
    # .item(); one tiny host read of params[:, 0] is unavoidable for that.
    k_host = np.asarray(jax.device_get(params[:, 0]), dtype=np.float64)

    filt = jnp.zeros((B, C, H, W), jnp.float32)
    disp = jnp.zeros((B, C, H), jnp.float32)
    colsum = jnp.zeros((B, C, W), jnp.float32)

    groups = {}
    for i in range(B):
        k_long = int(k_host[i])                               # torch .long() truncation
        ks = 2 * int(1.0 + 2.0 / (1.0 + math.exp(-k_long))) + 1   # -> 3 or 5
        groups.setdefault(ks, []).append(i)

    for ks, idx_list in sorted(groups.items()):
        idx = jnp.asarray(idx_list, dtype=jnp.int32)
        xg = x[idx]
        pg = params[idx].astype(jnp.float32)
        sigma1 = 3.5 + 5.5 * jax.nn.sigmoid(pg[:, 1])          # (Bg,)
        sigma2 = 5.5 + 7.5 * jax.nn.sigmoid(pg[:, 2])          # (Bg,)
        coords = np.arange(ks, dtype=np.float32) - ks // 2
        g2 = jnp.asarray((coords[None, :] ** 2 + coords[:, None] ** 2)
                         .reshape(1, ks * ks), jnp.float32)
        space = jnp.exp(-g2 / (2.0 * sigma1[:, None] ** 2))
        space = space / jnp.sum(space, axis=1, keepdims=True)  # (Bg, ks*ks)
        scal = 1.0 / (2.0 * sigma2 ** 2)                       # (Bg,)

        fn = _get_bilateral_fn(ks, len(idx_list), C, H, W)
        fg, dg, cg = fn(xg, space.astype(jnp.float32), scal.astype(jnp.float32))
        filt = filt.at[idx].set(fg)
        disp = disp.at[idx].set(dg)
        colsum = colsum.at[idx].set(cg)
    return filt, disp, colsum


# ----------------------------------------------------------------------------
# Kernel 3: batched (w,w)@(w,w) matmuls on the MXU, bf16 cast fused in-kernel.
# ----------------------------------------------------------------------------
def _bmm_kernel(a_ref, b_ref, o_ref):
    a = a_ref[...].astype(jnp.bfloat16)          # fused cast: no standalone XLA pass
    b = b_ref[...].astype(jnp.bfloat16)
    o_ref[...] = jnp.einsum("bij,bjk->bik", a, b,
                            preferred_element_type=jnp.float32)


def batched_matmul(a, b):
    B, H, W, _ = a.shape
    bh = B * H
    a2 = a.reshape(bh, W, W).astype(jnp.float32)
    b2 = b.reshape(bh, W, W).astype(jnp.float32)
    per_row = W * W * 4 * 6                      # 2 f32 in + 1 f32 out, double-buffered
    tb, bhp = _pick_tb(bh, per_row, _TB_BUDGET)
    if bhp != bh:
        pad = ((0, bhp - bh), (0, 0), (0, 0))
        a2 = jnp.pad(a2, pad)
        b2 = jnp.pad(b2, pad)
    out = pl.pallas_call(
        _bmm_kernel,
        grid=(bhp // tb,),
        in_specs=[pl.BlockSpec((tb, W, W), lambda i: (i, 0, 0)),
                  pl.BlockSpec((tb, W, W), lambda i: (i, 0, 0))],
        out_specs=pl.BlockSpec((tb, W, W), lambda i: (i, 0, 0)),
        out_shape=jax.ShapeDtypeStruct((bhp, W, W), jnp.float32),
        compiler_params=pltpu.CompilerParams(
            dimension_semantics=("parallel",),
            vmem_limit_bytes=_VMEM_LIMIT),
    )(a2, b2)
    if bhp != bh:
        out = out[:bh]
    return out.reshape(B, H, W, W)


# ----------------------------------------------------------------------------
# Glue: morphologic_process (stub) + device-side regress_disp + forward
# ----------------------------------------------------------------------------
def morphologic_process(mask_bool):
    # TODO(synk): skimage.morphology remove_small_objects/holes + binary_closing
    # have no Pallas/JAX equivalent; the boolean mask is passed through as float.
    return mask_bool.astype(jnp.float32)


def regress_disp_from_ini(disp_ini, valid_mask):
    """Hole filling with device-side lax.while_loop (no host syncs per iter)."""
    w = disp_ini.shape[-1]

    def conv1(x):  # correlation with [1,1,0]: out[x] = in[x-1] + in[x]
        xp = jnp.pad(x, ((0, 0), (0, 0), (0, 0), (1, 1)))
        return xp[..., 0:w] + xp[..., 1:w + 1]

    def conv2(x):  # correlation with [0,1,1]: out[x] = in[x] + in[x+1]
        xp = jnp.pad(x, ((0, 0), (0, 0), (0, 0), (1, 1)))
        return xp[..., 1:w + 1] + xp[..., 2:w + 2]

    def run(conv, disp, vm0):
        def cond(carry):
            return carry[2] > 0.0

        def body(carry):
            disp, vm0, _ = carry
            vm1 = conv(vm0)
            vm1_pos = (vm1 > 0).astype(jnp.float32)
            disp = disp * vm0 + conv(disp) / (vm1 + 1e-4) * (vm1_pos - vm0)
            num = jnp.sum(vm1_pos) - jnp.sum(vm0)
            return disp, vm1_pos, num

        disp, vm0, _ = lax.while_loop(
            cond, body, (disp, vm0, jnp.asarray(1.0, dtype=jnp.float32)))
        return disp, vm0

    vm0 = valid_mask
    disp = disp_ini * vm0
    disp, vm0 = run(conv1, disp, vm0)
    disp, vm0 = run(conv2, disp, vm0)
    return disp_ini * valid_mask + disp * (1.0 - valid_mask)


def output_cost3_forward(cost, max_disp, cost_s3_fea, training=True):
    cost_right2left, cost_left2right = cost
    b, h, w, _ = cost_right2left.shape

    att_r2l = masked_band_softmax(cost_right2left, max_disp, lower=True)
    att_r2l, disp_rows, colsum_r2l = bilateral_filter_fused(att_r2l, cost_s3_fea)

    att_l2r = masked_band_softmax(cost_left2right, max_disp, lower=False)
    att_l2r, _, colsum_l2r = bilateral_filter_fused(att_l2r, cost_s3_fea)

    valid_mask_left = morphologic_process((colsum_l2r > 0.1).reshape(b, 1, h, w))

    disp_ini = disp_rows.reshape(b, 1, h, w)
    disp = regress_disp_from_ini(disp_ini, valid_mask_left)

    if training:
        valid_mask_right = morphologic_process((colsum_r2l > 0.1).reshape(b, 1, h, w))
        att_l2r2l = batched_matmul(att_r2l, att_l2r)
        att_r2l2r = batched_matmul(att_l2r, att_r2l)
        return (disp,
                (att_r2l, att_l2r),
                (att_l2r2l, att_r2l2r),
                (valid_mask_left, valid_mask_right))
    return disp


if __name__ == "__main__":
    key = jax.random.PRNGKey(0)
    b, h, w = 2, 8, 16
    max_disp = 4
    k1, k2, k3 = jax.random.split(key, 3)
    cost_r2l = jax.random.normal(k1, (b, h, w, w), jnp.float32)
    cost_l2r = jax.random.normal(k2, (b, h, w, w), jnp.float32)
    cost_s3_fea = jax.random.normal(k3, (b, 3), jnp.float32)

    out = output_cost3_forward((cost_r2l, cost_l2r), max_disp, cost_s3_fea,
                               training=True)
    for leaf in jax.tree_util.tree_leaves(out):
        jax.block_until_ready(leaf)
    print("KERNEL_OK")
</pallas_src>

<mosaic_0001>
module attributes {stable_mosaic.version = 11 : i64} {
  func.func @_masked_softmax_kernel(%arg0: i32, %arg1: memref<8x16x16xf32, #tpu.memory_space<vmem>>, %arg2: memref<8x16x16xf32, #tpu.memory_space<vmem>>) attributes {dimension_semantics = [#tpu.dimension_semantics<parallel>], iteration_bounds = array<i64: 2>, scalar_prefetch = 0 : i64, scratch_operands = 0 : i64, tpu.core_type = #tpu.core_type<tc>, window_params = [{transform_indices = @transform_0, window_bounds = array<i64: 8, 16, 16>}, {transform_indices = @transform_1, window_bounds = array<i64: 8, 16, 16>}]} {
    %c0 = arith.constant 0 : index
    %c0_0 = arith.constant 0 : index
    %c0_1 = arith.constant 0 : index
    %0 = vector.load %arg1[%c0, %c0_0, %c0_1] : memref<8x16x16xf32, #tpu.memory_space<vmem>>, vector<8x16x16xf32>
    %1 = tpu.iota {dimensions = array<i32: 0>} : vector<16x16xi32>
    %2 = tpu.iota {dimensions = array<i32: 1>} : vector<16x16xi32>
    %3 = arith.cmpi sle, %2, %1 : vector<16x16xi32>
    %c4_i32 = arith.constant 4 : i32
    %4 = vector.broadcast %c4_i32 : i32 to vector<16x16xi32>
    %5 = arith.subi %1, %4 : vector<16x16xi32>
    %6 = arith.cmpi sgt, %2, %5 : vector<16x16xi32>
    %7 = arith.andi %3, %6 : vector<16x16xi1>
    %cst = arith.constant 0.000000e+00 : f32
    %8 = vector.shape_cast %7 : vector<16x16xi1> to vector<1x16x16xi1>
    %9 = vector.broadcast %8 : vector<1x16x16xi1> to vector<8x16x16xi1>
    %10 = vector.broadcast %cst : f32 to vector<8x16x16xf32>
    %11 = arith.select %9, %0, %10 : vector<8x16x16xi1>, vector<8x16x16xf32>
    %cst_2 = arith.constant dense<0xFF800000> : vector<8x16xf32>
    %12 = vector.multi_reduction <maximumf>, %11, %cst_2 [2] : vector<8x16x16xf32> to vector<8x16xf32>
    %13 = vector.shape_cast %12 : vector<8x16xf32> to vector<8x16x1xf32>
    %14 = vector.broadcast %13 : vector<8x16x1xf32> to vector<8x16x16xf32>
    %15 = arith.subf %11, %14 : vector<8x16x16xf32>
    %16 = math.exp %15 : vector<8x16x16xf32>
    %cst_3 = arith.constant 0.000000e+00 : f32
    %17 = vector.shape_cast %7 : vector<16x16xi1> to vector<1x16x16xi1>
    %18 = vector.broadcast %17 : vector<1x16x16xi1> to vector<8x16x16xi1>
    %19 = vector.broadcast %cst_3 : f32 to vector<8x16x16xf32>
    %20 = arith.select %18, %16, %19 : vector<8x16x16xi1>, vector<8x16x16xf32>
    %cst_4 = arith.constant dense<0.000000e+00> : vector<8x16xf32>
    %21 = vector.multi_reduction <add>, %20, %cst_4 [2] : vector<8x16x16xf32> to vector<8x16xf32>
    %22 = vector.shape_cast %21 : vector<8x16xf32> to vector<8x16x1xf32>
    %cst_5 = arith.constant 9.99999993E-9 : f32
    %23 = vector.broadcast %cst_5 : f32 to vector<8x16x1xf32>
    %24 = arith.addf %22, %23 : vector<8x16x1xf32>
    %25 = vector.broadcast %24 : vector<8x16x1xf32> to vector<8x16x16xf32>
    %26 = arith.divf %20, %25 : vector<8x16x16xf32>
    %c0_6 = arith.constant 0 : index
    %c0_7 = arith.constant 0 : index
    %c0_8 = arith.constant 0 : index
    %27 = vector.load %arg2[%c0_6, %c0_7, %c0_8] : memref<8x16x16xf32, #tpu.memory_space<vmem>>, vector<8x16x16xf32>
    tpu.vector_store %arg2[%c0_6, %c0_7, %c0_8], %26 {strides = array<i32>} : memref<8x16x16xf32, #tpu.memory_space<vmem>>, vector<8x16x16xf32>,
    return
  }
  func.func @transform_0(%arg0: i32) -> (i32, i32, i32) {
    %c0_i32 = arith.constant 0 : i32
    %c0_i32_0 = arith.constant 0 : i32
    %c0_i32_1 = arith.constant 0 : i32
    return %arg0, %c0_i32, %c0_i32_0 : i32, i32, i32
  }
  func.func @transform_1(%arg0: i32) -> (i32, i32, i32) {
    %c0_i32 = arith.constant 0 : i32
    %c0_i32_0 = arith.constant 0 : i32
    %c0_i32_1 = arith.constant 0 : i32
    return %arg0, %c0_i32, %c0_i32_0 : i32, i32, i32
  }
}

</mosaic_0001>

<llo_original>
// kernel: tpu_custom_call.1
$region0: #{tpu_custom_call.1}
  #allocation0 [shape = 'u32[]', space=smem, size = 0x4, offset = 0x4, fixed_abs, tag = 'smem constant byte address 0x4 - core index']
  #allocation1 [shape = 'u32[72,128]{1,0:T(1,128)}', space=vmem, size = 0x9000, scoped, tag = 'internal scratch']
  %s0 = inlined_call_operand.hbm [shape: f32[16,16,16], index: 0, kind: input, shape index: {}]
  %s1 = inlined_call_operand.hbm [shape: f32[16,16,16], index: 1, kind: output, shape index: {}]
  %s2 = sld [smem:[#allocation0]]
  $region41: #{tpu_custom_call.1} parent=0
    _
  %s4 = ssub.s32 1, %s2
  %s5 = scalar_select 0, %s4, %s2
  $region1: #{tpu_custom_call.1} parent=0
    #allocation2 [shape = 'u8[131072]{0}', space=vmem, size = 0x20000, scoped, tag = 'input window, operand 0']
    #allocation3 [shape = 's32[2]{0}', space=sflag, size = 0x8, scoped, tag = 'scoped memory for tpu_custom_call.1']
    #allocation4 [shape = 's32[2]{0}', space=sflag, size = 0x8, scoped, tag = 'scoped memory for tpu_custom_call.1']
    #allocation5 [shape = 'u8[131072]{0}', space=vmem, size = 0x20000, scoped, tag = 'output window, operand 0']
    %6 = vsyncpa [#allocation3], 0
    %s7 = scalar_lea.sflag [#allocation3], 1
    %8 = vsyncpa %s7, 0
    %9 = vsyncpa [#allocation4], 0
    %s10 = scalar_lea.sflag [#allocation4], 1
    %11 = vsyncpa %s10, 0
    loop: start=0, step=1, limit=4
    $region2: #{tpu_custom_call.1} parent=1 // loop_pre_header
      _
    $region3: #{tpu_custom_call.1} parent=1 // loop_header
      %s13 = sphi 0, %s17
      %p14 = scmp.ge.s32.totalorder %s13, 4
      %s23 = sphi 0, %s25
      %s26 = sphi 0, %s23
      %s27 = sphi 0, %s26
      %s43 = sphi 0, %s27
      %s49 = sphi 0, %s51
      %s52 = sphi 0, %s49
      %s53 = sphi 0, %s52
      %s69 = sphi 0, %s53
    $region4: #{tpu_custom_call.1} parent=1 // loop_header_branch
      %16 = sbr.rel (%p14) target = $region8
    $region5: #{tpu_custom_call.1} parent=1 // loop_body
      %s18 = ssub.s32 %s13, 1
      %s19 = ssub.s32 %s13, 2
      %s20 = sadd.s32 %s13, 1
      %s21 = ssub.s32 %s13, %s20
      %p22 = scmp.eq.s32.totalorder %s21, 0
      %s24 = sadd.s32 %s23, 1
      %s25 = scalar_select %p22, %s23, %s24
      %p28 = pneg %p22
      %p29 = scmp.eq.s32.totalorder %s13, 1
      %p30 = por %p28, %p29
      %p31 = scmp.ne.s32.totalorder %s23, %s26
      %p32 = scmp.eq.s32.totalorder %s13, 0
      %p33 = por %p31, %p32
      %p34 = scmp.ne.s32.totalorder %s23, %s26
      %p35 = scmp.eq.s32.totalorder %s18, 1
      %p36 = por %p34, %p35
      %p37 = scmp.ne.s32.totalorder %s26, %s27
      %p38 = scmp.eq.s32.totalorder %s18, 0
      %p39 = por %p37, %p38
      %p40 = scmp.ne.s32.totalorder %s26, %s27
      %p41 = scmp.eq.s32.totalorder %s19, 1
      %p42 = por %p40, %p41
      %p44 = scmp.ne.s32.totalorder %s27, %s43
      %p45 = scmp.eq.s32.totalorder %s19, 0
      %p46 = por %p44, %p45
      %s47 = ssub.s32 %s13, %s20
      %p48 = scmp.eq.s32.totalorder %s47, 0
      %s50 = sadd.s32 %s49, 1
      %s51 = scalar_select %p48, %s49, %s50
      %p54 = pneg %p48
      %p55 = scmp.eq.s32.totalorder %s13, 1
      %p56 = por %p54, %p55
      %p57 = scmp.ne.s32.totalorder %s49, %s52
      %p58 = scmp.eq.s32.totalorder %s13, 0
      %p59 = por %p57, %p58
      %p60 = scmp.ne.s32.totalorder %s49, %s52
      %p61 = scmp.eq.s32.totalorder %s18, 1
      %p62 = por %p60, %p61
      %p63 = scmp.ne.s32.totalorder %s52, %s53
      %p64 = scmp.eq.s32.totalorder %s18, 0
      %p65 = por %p63, %p64
      %p66 = scmp.ne.s32.totalorder %s52, %s53
      %p67 = scmp.eq.s32.totalorder %s19, 1
      %p68 = por %p66, %p67
      %p70 = scmp.ne.s32.totalorder %s53, %s69
      %p71 = scmp.eq.s32.totalorder %s19, 0
      %p72 = por %p70, %p71
      %p73 = scmp.le.s32.totalorder 1, %s13
      %p74 = scmp.lt.s32.totalorder %s13, 3
      %p75 = pnand %p73, %p74
      %p76 = pneg %p75
      // Predicated region
      $region9: #{tpu_custom_call.1} parent=5 // pred_check
        _
      $region10: #{tpu_custom_call.1} parent=5 // pred_check_branch
        %78 = sbr.rel (%p75) target = $region12
      $region11: #{tpu_custom_call.1} parent=5 // pred_region
        %s79 = ssub.s32 %s13, 1
      $region12: #{tpu_custom_call.1} parent=5 // pred_fallthru
        _
      %p80 = scmp.lt.s32.totalorder %s13, 2
      // Predicated region
      $region13: #{tpu_custom_call.1} parent=5 // pred_check
        %p81 = pneg %p80
      $region14: #{tpu_custom_call.1} parent=5 // pred_check_branch
        %83 = sbr.rel (%p81) target = $region16
      $region15: #{tpu_custom_call.1} parent=5 // pred_region
        // Predicated region
        $region17: #{tpu_custom_call.1} parent=15 // pred_check
          %p84 = pneg %p33
        $region18: #{tpu_custom_call.1} parent=15 // pred_check_branch
          %86 = sbr.rel (%p84) target = $region20
        $region19: #{tpu_custom_call.1} parent=15 // pred_region
          %s87 = sand.u32 %s23, 1
          %s88 = scalar_lea.sflag [#allocation3], %s87
          %s89 = sand.u32 %s23, 1
          %s90 = smul.addr %s89, 128
          %s91 = scalar_lea.vmem [#allocation2], %s90
          %s92 = smul.u32 8, %s13
          %94 = vsyncadd %s88, 0
          %s95 = smul.addr %s92, 2
          %s96 = smul.addr %s95, 8
          %s97 = scalar_lea.hbm %s0, %s96
          %s98 = sshll.u32 %s97, 4
          %s99 = int_to_ptr.hbm [resolvable:$true] %s98
          %s100 = sshll.u32 %s91, 4
          %s101 = int_to_ptr.vmem [resolvable:$true] %s100
          %106 = dma.hbm_to_vmem [thread:$0]  %s99, 2048, %s101, %s88, 128, 128, 8
        $region20: #{tpu_custom_call.1} parent=15 // pred_fallthru
          _
      $region16: #{tpu_custom_call.1} parent=5 // pred_fallthru
        _
      %p107 = scmp.le.s32.totalorder 1, %s13
      %p108 = scmp.lt.s32.totalorder %s13, 3
      %p109 = pnand %p107, %p108
      %p110 = pneg %p109
      // Predicated region
      $region21: #{tpu_custom_call.1} parent=5 // pred_check
        _
      $region22: #{tpu_custom_call.1} parent=5 // pred_check_branch
        %112 = sbr.rel (%p109) target = $region24
      $region23: #{tpu_custom_call.1} parent=5 // pred_region
        %s113 = ssub.s32 %s13, 1
        %s114 = sand.u32 %s26, 1
        %s115 = scalar_lea.sflag [#allocation3], %s114
        %s116 = sand.u32 %s26, 1
        %s117 = smul.addr %s116, 128
        %s118 = scalar_lea.vmem [#allocation2], %s117
        // Predicated region
        $region25: #{tpu_custom_call.1} parent=23 // pred_check
          %p119 = pneg %p39
        $region26: #{tpu_custom_call.1} parent=23 // pred_check_branch
          %121 = sbr.rel (%p119) target = $region28
        $region27: #{tpu_custom_call.1} parent=23 // pred_region
          %123 = dma.done %s115, 2048
        $region28: #{tpu_custom_call.1} parent=23 // pred_fallthru
          _
        %s124 = sand.u32 %s26, 1
        %s125 = scalar_lea.sflag [#allocation3], %s124
        %s126 = sand.u32 %s26, 1
        %s127 = smul.addr %s126, 128
        %s128 = scalar_lea.vmem [#allocation2], %s127
        %p129 = pneg %p39
        %p130 = pneg %p36
        %p131 = pneg %p65
        %p132 = pneg %p62
        %s133 = sand.u32 %s52, 1
        %s134 = scalar_lea.sflag [#allocation4], %s133
        %s135 = sand.u32 %s52, 1
        %s136 = smul.addr %s135, 128
        %s137 = scalar_lea.vmem [#allocation5], %s136
        %s138 = smul.u32 8, %s18
        %s139 = smul.u32 8, %s18
        %v140 = vld [vmem:[%s118] sm:$0xff]
        %v141 = vld [vmem:[%s118 + $0x8] sm:$0xff]
        %v142 = vld [vmem:[%s118 + $0x10] sm:$0xff]
        %v143 = vld [vmem:[%s118 + $0x18] sm:$0xff]
        %v144 = vld [vmem:[%s118 + $0x20] sm:$0xff]
        %v145 = vld [vmem:[%s118 + $0x28] sm:$0xff]
        %v146 = vld [vmem:[%s118 + $0x30] sm:$0xff]
        %v147 = vld [vmem:[%s118 + $0x38] sm:$0xff]
        %v148 = vld [vmem:[%s118 + $0x40] sm:$0xff]
        %v149 = vld [vmem:[%s118 + $0x48] sm:$0xff]
        %v150 = vld [vmem:[%s118 + $0x50] sm:$0xff]
        %v151 = vld [vmem:[%s118 + $0x58] sm:$0xff]
        %v152 = vld [vmem:[%s118 + $0x60] sm:$0xff]
        %v153 = vld [vmem:[%s118 + $0x68] sm:$0xff]
        %v154 = vld [vmem:[%s118 + $0x70] sm:$0xff]
        %v155 = vld [vmem:[%s118 + $0x78] sm:$0xff]
        %v156 = vlaneseq
        %v157 = vshrl.u32 %v156, 7
        %v158 = vadd.s32 %v157, 8
        %v159 = vlaneseq
        %v160 = vand.u32 %v159, 127
        %vm161 = vcmp.le.s32.totalorder %v160, %v157
        %vm162 = vcmp.le.s32.totalorder %v160, %v158
        %v163 = vsub.s32 %v157, 4
        %v164 = vsub.s32 %v158, 4
        %vm165 = vcmp.gt.s32.totalorder %v160, %v163
        %vm166 = vcmp.gt.s32.totalorder %v160, %v164
        %vm167 = vmand %vm161, %vm165
        %vm168 = vmand %vm162, %vm166
        %v169 = vsel %vm167, 1, 0
        %v170 = vsel %vm168, 1, 0
        %vm171 = vcmp.eq.s32.totalorder %v169, 1
        %vm172 = vcmp.eq.s32.totalorder %v170, 1
        %v173 = vsel %vm171, %v140, 0.0
        %v174 = vsel %vm172, %v141, 0.0
        %v175 = vsel %vm171, %v142, 0.0
        %v176 = vsel %vm172, %v143, 0.0
        %v177 = vsel %vm171, %v144, 0.0
        %v178 = vsel %vm172, %v145, 0.0
        %v179 = vsel %vm171, %v146, 0.0
        %v180 = vsel %vm172, %v147, 0.0
        %v181 = vsel %vm171, %v148, 0.0
        %v182 = vsel %vm172, %v149, 0.0
        %v183 = vsel %vm171, %v150, 0.0
        %v184 = vsel %vm172, %v151, 0.0
        %v185 = vsel %vm171, %v152, 0.0
        %v186 = vsel %vm172, %v153, 0.0
        %v187 = vsel %vm171, %v154, 0.0
        %v188 = vsel %vm172, %v155, 0.0
        %vm189 = vcmask 130048
        %v190 = vsel %vm189, %v173, -inf
        %191 = vmax.xlane.f32.xlu0 %v190
        %v192 = vpop.xlane.xlu0 %191
        %v193 = vsel %vm189, %v174, -inf
        %194 = vmax.xlane.f32.xlu0 %v193
        %v195 = vpop.xlane.xlu0 %194
        %v196 = vsel %vm189, %v175, -inf
        %197 = vmax.xlane.f32.xlu0 %v196
        %v198 = vpop.xlane.xlu0 %197
        %v199 = vsel %vm189, %v176, -inf
        %200 = vmax.xlane.f32.xlu0 %v199
        %v201 = vpop.xlane.xlu0 %200
        %v202 = vsel %vm189, %v177, -inf
        %203 = vmax.xlane.f32.xlu0 %v202
        %v204 = vpop.xlane.xlu0 %203
        %v205 = vsel %vm189, %v178, -inf
        %206 = vmax.xlane.f32.xlu0 %v205
        %v207 = vpop.xlane.xlu0 %206
        %v208 = vsel %vm189, %v179, -inf
        %209 = vmax.xlane.f32.xlu0 %v208
        %v210 = vpop.xlane.xlu0 %209
        %v211 = vsel %vm189, %v180, -inf
        %212 = vmax.xlane.f32.xlu0 %v211
        %v213 = vpop.xlane.xlu0 %212
        %v214 = vsel %vm189, %v181, -inf
        %215 = vmax.xlane.f32.xlu0 %v214
        %v216 = vpop.xlane.xlu0 %215
        %v217 = vsel %vm189, %v182, -inf
        %218 = vmax.xlane.f32.xlu0 %v217
        %v219 = vpop.xlane.xlu0 %218
        %v220 = vsel %vm189, %v183, -inf
        %221 = vmax.xlane.f32.xlu0 %v220
        %v222 = vpop.xlane.xlu0 %221
        %v223 = vsel %vm189, %v184, -inf
        %224 = vmax.xlane.f32.xlu0 %v223
        %v225 = vpop.xlane.xlu0 %224
        %v226 = vsel %vm189, %v185, -inf
        %227 = vmax.xlane.f32.xlu0 %v226
        %v228 = vpop.xlane.xlu0 %227
        %v229 = vsel %vm189, %v186, -inf
        %230 = vmax.xlane.f32.xlu0 %v229
        %v231 = vpop.xlane.xlu0 %230
        %v232 = vsel %vm189, %v187, -inf
        %233 = vmax.xlane.f32.xlu0 %v232
        %v234 = vpop.xlane.xlu0 %233
        %v235 = vsel %vm189, %v188, -inf
        %236 = vmax.xlane.f32.xlu0 %v235
        %v237 = vpop.xlane.xlu0 %236
        %v238 = vsub.f32 %v173, %v192
        %v239 = vsub.f32 %v174, %v195
        %v240 = vsub.f32 %v175, %v198
        %v241 = vsub.f32 %v176, %v201
        %v242 = vsub.f32 %v177, %v204
        %v243 = vsub.f32 %v178, %v207
        %v244 = vsub.f32 %v179, %v210
        %v245 = vsub.f32 %v180, %v213
        %v246 = vsub.f32 %v181, %v216
        %v247 = vsub.f32 %v182, %v219
        %v248 = vsub.f32 %v183, %v222
        %v249 = vsub.f32 %v184, %v225
        %v250 = vsub.f32 %v185, %v228
        %v251 = vsub.f32 %v186, %v231
        %v252 = vsub.f32 %v187, %v234
        %v253 = vsub.f32 %v188, %v237
        %v254 = vmul.f32 %v238, 1.442695
        %v255 = vpow.pop %v254
        %v256 = vmul.f32 %v239, 1.442695
        %v257 = vpow.pop %v256
        %v258 = vmul.f32 %v240, 1.442695
        %v259 = vpow.pop %v258
        %v260 = vmul.f32 %v241, 1.442695
        %v261 = vpow.pop %v260
        %v262 = vmul.f32 %v242, 1.442695
        %v263 = vpow.pop %v262
        %v264 = vmul.f32 %v243, 1.442695
        %v265 = vpow.pop %v264
        %v266 = vmul.f32 %v244, 1.442695
        %v267 = vpow.pop %v266
        %v268 = vmul.f32 %v245, 1.442695
        %v269 = vpow.pop %v268
        %v270 = vmul.f32 %v246, 1.442695
        %v271 = vpow.pop %v270
        %v272 = vmul.f32 %v247, 1.442695
        %v273 = vpow.pop %v272
        %v274 = vmul.f32 %v248, 1.442695
        %v275 = vpow.pop %v274
        %v276 = vmul.f32 %v249, 1.442695
        %v277 = vpow.pop %v276
        %v278 = vmul.f32 %v250, 1.442695
        %v279 = vpow.pop %v278
        %v280 = vmul.f32 %v251, 1.442695
        %v281 = vpow.pop %v280
        %v282 = vmul.f32 %v252, 1.442695
        %v283 = vpow.pop %v282
        %v284 = vmul.f32 %v253, 1.442695
        %v285 = vpow.pop %v284
        %v286 = vsel %vm171, %v255, 0.0
        %v287 = vsel %vm172, %v257, 0.0
        %v288 = vsel %vm171, %v259, 0.0
        %v289 = vsel %vm172, %v261, 0.0
        %v290 = vsel %vm171, %v263, 0.0
        %v291 = vsel %vm172, %v265, 0.0
        %v292 = vsel %vm171, %v267, 0.0
        %v293 = vsel %vm172, %v269, 0.0
        %v294 = vsel %vm171, %v271, 0.0
        %v295 = vsel %vm172, %v273, 0.0
        %v296 = vsel %vm171, %v275, 0.0
        %v297 = vsel %vm172, %v277, 0.0
        %v298 = vsel %vm171, %v279, 0.0
        %v299 = vsel %vm172, %v281, 0.0
        %v300 = vsel %vm171, %v283, 0.0
        %v301 = vsel %vm172, %v285, 0.0
        %v302 = vsel %vm189, %v286, 0.0
        %303 = vadd.xlane.f32.xlu0 %v302
        %v304 = vpop.xlane.xlu0 %303
        %v305 = vsel %vm189, %v287, 0.0
        %306 = vadd.xlane.f32.xlu0 %v305
        %v307 = vpop.xlane.xlu0 %306
        %v308 = vsel %vm189, %v288, 0.0
        %309 = vadd.xlane.f32.xlu0 %v308
        %v310 = vpop.xlane.xlu0 %309
        %v311 = vsel %vm189, %v289, 0.0
        %312 = vadd.xlane.f32.xlu0 %v311
        %v313 = vpop.xlane.xlu0 %312
        %v314 = vsel %vm189, %v290, 0.0
        %315 = vadd.xlane.f32.xlu0 %v314
        %v316 = vpop.xlane.xlu0 %315
        %v317 = vsel %vm189, %v291, 0.0
        %318 = vadd.xlane.f32.xlu0 %v317
        %v319 = vpop.xlane.xlu0 %318
        %v320 = vsel %vm189, %v292, 0.0
        %321 = vadd.xlane.f32.xlu0 %v320
        %v322 = vpop.xlane.xlu0 %321
        %v323 = vsel %vm189, %v293, 0.0
        %324 = vadd.xlane.f32.xlu0 %v323
        %v325 = vpop.xlane.xlu0 %324
        %v326 = vsel %vm189, %v294, 0.0
        %327 = vadd.xlane.f32.xlu0 %v326
        %v328 = vpop.xlane.xlu0 %327
        %v329 = vsel %vm189, %v295, 0.0
        %330 = vadd.xlane.f32.xlu0 %v329
        %v331 = vpop.xlane.xlu0 %330
        %v332 = vsel %vm189, %v296, 0.0
        %333 = vadd.xlane.f32.xlu0 %v332
        %v334 = vpop.xlane.xlu0 %333
        %v335 = vsel %vm189, %v297, 0.0
        %336 = vadd.xlane.f32.xlu0 %v335
        %v337 = vpop.xlane.xlu0 %336
        %v338 = vsel %vm189, %v298, 0.0
        %339 = vadd.xlane.f32.xlu0 %v338
        %v340 = vpop.xlane.xlu0 %339
        %v341 = vsel %vm189, %v299, 0.0
        %342 = vadd.xlane.f32.xlu0 %v341
        %v343 = vpop.xlane.xlu0 %342
        %v344 = vsel %vm189, %v300, 0.0
        %345 = vadd.xlane.f32.xlu0 %v344
        %v346 = vpop.xlane.xlu0 %345
        %v347 = vsel %vm189, %v301, 0.0
        %348 = vadd.xlane.f32.xlu0 %v347
        %v349 = vpop.xlane.xlu0 %348
        %v350 = vadd.f32 %v304, 1e-08
        %v351 = vadd.f32 %v307, 1e-08
        %v352 = vadd.f32 %v310, 1e-08
        %v353 = vadd.f32 %v313, 1e-08
        %v354 = vadd.f32 %v316, 1e-08
        %v355 = vadd.f32 %v319, 1e-08
        %v356 = vadd.f32 %v322, 1e-08
        %v357 = vadd.f32 %v325, 1e-08
        %v358 = vadd.f32 %v328, 1e-08
        %v359 = vadd.f32 %v331, 1e-08
        %v360 = vadd.f32 %v334, 1e-08
        %v361 = vadd.f32 %v337, 1e-08
        %v362 = vadd.f32 %v340, 1e-08
        %v363 = vadd.f32 %v343, 1e-08
        %v364 = vadd.f32 %v346, 1e-08
        %v365 = vadd.f32 %v349, 1e-08
        %v366 = vrcp.pop %v350
        %v367 = vmul.f32 %v350, %v366
        %v368 = vsub.f32 1.0, %v367
        %v369 = vmul.f32 %v366, %v368
        %v370 = vadd.f32 %v366, %v369
        %vm371 = vweird.f32 %v350
        %vm372 = vweird.f32 %v366
        %vm373 = vmor %vm371, %vm372
        %v374 = vsel %vm373, %v366, %v370
        %v375 = vand.u32 2147483647, %v350
        %vm376 = vcmp.eq.f32.partialorder %v375, 8.507059e+37
        %v377 = vand.u32 %v350, 2147483648
        %v378 = vor.u32 1.1754944e-38, %v377
        %v379 = vsel %vm376, %v378, %v374
        %v380 = vmul.f32 %v286, %v379
        %v381 = vrcp.pop %v351
        %v382 = vmul.f32 %v351, %v381
        %v383 = vsub.f32 1.0, %v382
        %v384 = vmul.f32 %v381, %v383
        %v385 = vadd.f32 %v381, %v384
        %vm386 = vweird.f32 %v351
        %vm387 = vweird.f32 %v381
        %vm388 = vmor %vm386, %vm387
        %v389 = vsel %vm388, %v381, %v385
        %v390 = vand.u32 2147483647, %v351
        %vm391 = vcmp.eq.f32.partialorder %v390, 8.507059e+37
        %v392 = vand.u32 %v351, 2147483648
        %v393 = vor.u32 1.1754944e-38, %v392
        %v394 = vsel %vm391, %v393, %v389
        %v395 = vmul.f32 %v287, %v394
        %v396 = vrcp.pop %v352
        %v397 = vmul.f32 %v352, %v396
        %v398 = vsub.f32 1.0, %v397
        %v399 = vmul.f32 %v396, %v398
        %v400 = vadd.f32 %v396, %v399
        %vm401 = vweird.f32 %v352
        %vm402 = vweird.f32 %v396
        %vm403 = vmor %vm401, %vm402
        %v404 = vsel %vm403, %v396, %v400
        %v405 = vand.u32 2147483647, %v352
        %vm406 = vcmp.eq.f32.partialorder %v405, 8.507059e+37
        %v407 = vand.u32 %v352, 2147483648
        %v408 = vor.u32 1.1754944e-38, %v407
        %v409 = vsel %vm406, %v408, %v404
        %v410 = vmul.f32 %v288, %v409
        %v411 = vrcp.pop %v353
        %v412 = vmul.f32 %v353, %v411
        %v413 = vsub.f32 1.0, %v412
        %v414 = vmul.f32 %v411, %v413
        %v415 = vadd.f32 %v411, %v414
        %vm416 = vweird.f32 %v353
        %vm417 = vweird.f32 %v411
        %vm418 = vmor %vm416, %vm417
        %v419 = vsel %vm418, %v411, %v415
        %v420 = vand.u32 2147483647, %v353
        %vm421 = vcmp.eq.f32.partialorder %v420, 8.507059e+37
        %v422 = vand.u32 %v353, 2147483648
        %v423 = vor.u32 1.1754944e-38, %v422
        %v424 = vsel %vm421, %v423, %v419
        %v425 = vmul.f32 %v289, %v424
        %v426 = vrcp.pop %v354
        %v427 = vmul.f32 %v354, %v426
        %v428 = vsub.f32 1.0, %v427
        %v429 = vmul.f32 %v426, %v428
        %v430 = vadd.f32 %v426, %v429
        %vm431 = vweird.f32 %v354
        %vm432 = vweird.f32 %v426
        %vm433 = vmor %vm431, %vm432
        %v434 = vsel %vm433, %v426, %v430
        %v435 = vand.u32 2147483647, %v354
        %vm436 = vcmp.eq.f32.partialorder %v435, 8.507059e+37
        %v437 = vand.u32 %v354, 2147483648
        %v438 = vor.u32 1.1754944e-38, %v437
        %v439 = vsel %vm436, %v438, %v434
        %v440 = vmul.f32 %v290, %v439
        %v441 = vrcp.pop %v355
        %v442 = vmul.f32 %v355, %v441
        %v443 = vsub.f32 1.0, %v442
        %v444 = vmul.f32 %v441, %v443
        %v445 = vadd.f32 %v441, %v444
        %vm446 = vweird.f32 %v355
        %vm447 = vweird.f32 %v441
        %vm448 = vmor %vm446, %vm447
        %v449 = vsel %vm448, %v441, %v445
        %v450 = vand.u32 2147483647, %v355
        %vm451 = vcmp.eq.f32.partialorder %v450, 8.507059e+37
        %v452 = vand.u32 %v355, 2147483648
        %v453 = vor.u32 1.1754944e-38, %v452
        %v454 = vsel %vm451, %v453, %v449
        %v455 = vmul.f32 %v291, %v454
        %v456 = vrcp.pop %v356
        %v457 = vmul.f32 %v356, %v456
        %v458 = vsub.f32 1.0, %v457
        %v459 = vmul.f32 %v456, %v458
        %v460 = vadd.f32 %v456, %v459
        %vm461 = vweird.f32 %v356
        %vm462 = vweird.f32 %v456
        %vm463 = vmor %vm461, %vm462
        %v464 = vsel %vm463, %v456, %v460
        %v465 = vand.u32 2147483647, %v356
        %vm466 = vcmp.eq.f32.partialorder %v465, 8.507059e+37
        %v467 = vand.u32 %v356, 2147483648
        %v468 = vor.u32 1.1754944e-38, %v467
        %v469 = vsel %vm466, %v468, %v464
        %v470 = vmul.f32 %v292, %v469
        %v471 = vrcp.pop %v357
        %v472 = vmul.f32 %v357, %v471
        %v473 = vsub.f32 1.0, %v472
        %v474 = vmul.f32 %v471, %v473
        %v475 = vadd.f32 %v471, %v474
        %vm476 = vweird.f32 %v357
        %vm477 = vweird.f32 %v471
        %vm478 = vmor %vm476, %vm477
        %v479 = vsel %vm478, %v471, %v475
        %v480 = vand.u32 2147483647, %v357
        %vm481 = vcmp.eq.f32.partialorder %v480, 8.507059e+37
        %v482 = vand.u32 %v357, 2147483648
        %v483 = vor.u32 1.1754944e-38, %v482
        %v484 = vsel %vm481, %v483, %v479
        %v485 = vmul.f32 %v293, %v484
        %v486 = vrcp.pop %v358
        %v487 = vmul.f32 %v358, %v486
        %v488 = vsub.f32 1.0, %v487
        %v489 = vmul.f32 %v486, %v488
        %v490 = vadd.f32 %v486, %v489
        %vm491 = vweird.f32 %v358
        %vm492 = vweird.f32 %v486
        %vm493 = vmor %vm491, %vm492
        %v494 = vsel %vm493, %v486, %v490
        %v495 = vand.u32 2147483647, %v358
        %vm496 = vcmp.eq.f32.partialorder %v495, 8.507059e+37
        %v497 = vand.u32 %v358, 2147483648
        %v498 = vor.u32 1.1754944e-38, %v497
        %v499 = vsel %vm496, %v498, %v494
        %v500 = vmul.f32 %v294, %v499
        %v501 = vrcp.pop %v359
        %v502 = vmul.f32 %v359, %v501
        %v503 = vsub.f32 1.0, %v502
        %v504 = vmul.f32 %v501, %v503
        %v505 = vadd.f32 %v501, %v504
        %vm506 = vweird.f32 %v359
        %vm507 = vweird.f32 %v501
        %vm508 = vmor %vm506, %vm507
        %v509 = vsel %vm508, %v501, %v505
        %v510 = vand.u32 2147483647, %v359
        %vm511 = vcmp.eq.f32.partialorder %v510, 8.507059e+37
        %v512 = vand.u32 %v359, 2147483648
        %v513 = vor.u32 1.1754944e-38, %v512
        %v514 = vsel %vm511, %v513, %v509
        %v515 = vmul.f32 %v295, %v514
        %v516 = vrcp.pop %v360
        %v517 = vmul.f32 %v360, %v516
        %v518 = vsub.f32 1.0, %v517
        %v519 = vmul.f32 %v516, %v518
        %v520 = vadd.f32 %v516, %v519
        %vm521 = vweird.f32 %v360
        %vm522 = vweird.f32 %v516
        %vm523 = vmor %vm521, %vm522
        %v524 = vsel %vm523, %v516, %v520
        %v525 = vand.u32 2147483647, %v360
        %vm526 = vcmp.eq.f32.partialorder %v525, 8.507059e+37
        %v527 = vand.u32 %v360, 2147483648
        %v528 = vor.u32 1.1754944e-38, %v527
        %v529 = vsel %vm526, %v528, %v524
        %v530 = vmul.f32 %v296, %v529
        %v531 = vrcp.pop %v361
        %v532 = vmul.f32 %v361, %v531
        %v533 = vsub.f32 1.0, %v532
        %v534 = vmul.f32 %v531, %v533
        %v535 = vadd.f32 %v531, %v534
        %vm536 = vweird.f32 %v361
        %vm537 = vweird.f32 %v531
        %vm538 = vmor %vm536, %vm537
        %v539 = vsel %vm538, %v531, %v535
        %v540 = vand.u32 2147483647, %v361
        %vm541 = vcmp.eq.f32.partialorder %v540, 8.507059e+37
        %v542 = vand.u32 %v361, 2147483648
        %v543 = vor.u32 1.1754944e-38, %v542
        %v544 = vsel %vm541, %v543, %v539
        %v545 = vmul.f32 %v297, %v544
        %v546 = vrcp.pop %v362
        %v547 = vmul.f32 %v362, %v546
        %v548 = vsub.f32 1.0, %v547
        %v549 = vmul.f32 %v546, %v548
        %v550 = vadd.f32 %v546, %v549
        %vm551 = vweird.f32 %v362
        %vm552 = vweird.f32 %v546
        %vm553 = vmor %vm551, %vm552
        %v554 = vsel %vm553, %v546, %v550
        %v555 = vand.u32 2147483647, %v362
        %vm556 = vcmp.eq.f32.partialorder %v555, 8.507059e+37
        %v557 = vand.u32 %v362, 2147483648
        %v558 = vor.u32 1.1754944e-38, %v557
        %v559 = vsel %vm556, %v558, %v554
        %v560 = vmul.f32 %v298, %v559
        %v561 = vrcp.pop %v363
        %v562 = vmul.f32 %v363, %v561
        %v563 = vsub.f32 1.0, %v562
        %v564 = vmul.f32 %v561, %v563
        %v565 = vadd.f32 %v561, %v564
        %vm566 = vweird.f32 %v363
        %vm567 = vweird.f32 %v561
        %vm568 = vmor %vm566, %vm567
        %v569 = vsel %vm568, %v561, %v565
        %v570 = vand.u32 2147483647, %v363
        %vm571 = vcmp.eq.f32.partialorder %v570, 8.507059e+37
        %v572 = vand.u32 %v363, 2147483648
        %v573 = vor.u32 1.1754944e-38, %v572
        %v574 = vsel %vm571, %v573, %v569
        %v575 = vmul.f32 %v299, %v574
        %v576 = vrcp.pop %v364
        %v577 = vmul.f32 %v364, %v576
        %v578 = vsub.f32 1.0, %v577
        %v579 = vmul.f32 %v576, %v578
        %v580 = vadd.f32 %v576, %v579
        %vm581 = vweird.f32 %v364
        %vm582 = vweird.f32 %v576
        %vm583 = vmor %vm581, %vm582
        %v584 = vsel %vm583, %v576, %v580
        %v585 = vand.u32 2147483647, %v364
        %vm586 = vcmp.eq.f32.partialorder %v585, 8.507059e+37
        %v587 = vand.u32 %v364, 2147483648
        %v588 = vor.u32 1.1754944e-38, %v587
        %v589 = vsel %vm586, %v588, %v584
        %v590 = vmul.f32 %v300, %v589
        %v591 = vrcp.pop %v365
        %v592 = vmul.f32 %v365, %v591
        %v593 = vsub.f32 1.0, %v592
        %v594 = vmul.f32 %v591, %v593
        %v595 = vadd.f32 %v591, %v594
        %vm596 = vweird.f32 %v365
        %vm597 = vweird.f32 %v591
        %vm598 = vmor %vm596, %vm597
        %v599 = vsel %vm598, %v591, %v595
        %v600 = vand.u32 2147483647, %v365
        %vm601 = vcmp.eq.f32.partialorder %v600, 8.507059e+37
        %v602 = vand.u32 %v365, 2147483648
        %v603 = vor.u32 1.1754944e-38, %v602
        %v604 = vsel %vm601, %v603, %v599
        %v605 = vmul.f32 %v301, %v604
        %606 = vst.msk [vmem:[%s137] sm:$0xff] %vm189, %v380
        %607 = vst.msk [vmem:[%s137 + $0x8] sm:$0xff] %vm189, %v395
        %608 = vst.msk [vmem:[%s137 + $0x10] sm:$0xff] %vm189, %v410
        %609 = vst.msk [vmem:[%s137 + $0x18] sm:$0xff] %vm189, %v425
        %610 = vst.msk [vmem:[%s137 + $0x20] sm:$0xff] %vm189, %v440
        %611 = vst.msk [vmem:[%s137 + $0x28] sm:$0xff] %vm189, %v455
        %612 = vst.msk [vmem:[%s137 + $0x30] sm:$0xff] %vm189, %v470
        %613 = vst.msk [vmem:[%s137 + $0x38] sm:$0xff] %vm189, %v485
        %614 = vst.msk [vmem:[%s137 + $0x40] sm:$0xff] %vm189, %v500
        %615 = vst.msk [vmem:[%s137 + $0x48] sm:$0xff] %vm189, %v515
        %616 = vst.msk [vmem:[%s137 + $0x50] sm:$0xff] %vm189, %v530
        %617 = vst.msk [vmem:[%s137 + $0x58] sm:$0xff] %vm189, %v545
        %618 = vst.msk [vmem:[%s137 + $0x60] sm:$0xff] %vm189, %v560
        %619 = vst.msk [vmem:[%s137 + $0x68] sm:$0xff] %vm189, %v575
        %620 = vst.msk [vmem:[%s137 + $0x70] sm:$0xff] %vm189, %v590
        %621 = vst.msk [vmem:[%s137 + $0x78] sm:$0xff] %vm189, %v605
        %s622 = sand.u32 %s52, 1
        %s623 = scalar_lea.sflag [#allocation4], %s622
        %s624 = sand.u32 %s52, 1
        %s625 = smul.addr %s624, 128
        %s626 = scalar_lea.vmem [#allocation5], %s625
        // Predicated region
        $region29: #{tpu_custom_call.1} parent=23 // pred_check
          %p627 = pneg %p62
        $region30: #{tpu_custom_call.1} parent=23 // pred_check_branch
          %629 = sbr.rel (%p627) target = $region32
        $region31: #{tpu_custom_call.1} parent=23 // pred_region
          %s630 = smul.u32 8, %s18
          %632 = vsyncadd %s623, 0
          %s633 = smul.addr %s630, 2
          %s634 = smul.addr %s633, 8
          %s635 = scalar_lea.hbm %s1, %s634
          %s636 = sshll.u32 %s626, 4
          %s637 = int_to_ptr.vmem [resolvable:$true] %s636
          %s638 = sshll.u32 %s635, 4
          %s639 = int_to_ptr.hbm [resolvable:$true] %s638
          %644 = dma.vmem_to_hbm [thread:$0]  %s637, 2048, %s639, %s623, 128, 128, 8
        $region32: #{tpu_custom_call.1} parent=23 // pred_fallthru
          _
      $region24: #{tpu_custom_call.1} parent=5 // pred_fallthru
        _
      %p645 = scmp.le.s32.totalorder 2, %s13
      // Predicated region
      $region33: #{tpu_custom_call.1} parent=5 // pred_check
        %p646 = pneg %p645
      $region34: #{tpu_custom_call.1} parent=5 // pred_check_branch
        %648 = sbr.rel (%p646) target = $region36
      $region35: #{tpu_custom_call.1} parent=5 // pred_region
        %s649 = ssub.s32 %s13, 2
        // Predicated region
        $region37: #{tpu_custom_call.1} parent=35 // pred_check
          %p650 = pneg %p68
        $region38: #{tpu_custom_call.1} parent=35 // pred_check_branch
          %652 = sbr.rel (%p650) target = $region40
        $region39: #{tpu_custom_call.1} parent=35 // pred_region
          %s653 = sand.u32 %s53, 1
          %s654 = scalar_lea.sflag [#allocation4], %s653
          %s655 = sand.u32 %s53, 1
          %s656 = smul.addr %s655, 128
          %s657 = scalar_lea.vmem [#allocation5], %s656
          %659 = dma.done %s654, 2048
        $region40: #{tpu_custom_call.1} parent=35 // pred_fallthru
          _
      $region36: #{tpu_custom_call.1} parent=5 // pred_fallthru
        _
    $region6: #{tpu_custom_call.1} parent=1 // loop_footer
      %s17 = sadd.s32 1, %s13
    $region7: #{tpu_custom_call.1} parent=1 // loop_footer_branch
      %12 = sbr.rel target = $region3
    $region8: #{tpu_custom_call.1} parent=1 // loop_exit
      _
    %660 = vsyncpa [#allocation3], 1
    %s661 = scalar_lea.sflag [#allocation3], 1
    %662 = vsyncpa %s661, 1
    %663 = vsyncpa [#allocation4], 1
    %s664 = scalar_lea.sflag [#allocation4], 1
    %665 = vsyncpa %s664, 1

</llo_original>
